<compile_context>
chip_gen: v5e
topology: v5e:2x2
jax: 0.10.0
libtpu: 0.0.40
codegen_flags: <defaults>
</compile_context>

<pallas_src>
import jax
import jax.numpy as jnp
from jax.experimental import pallas as pl
from jax.experimental.pallas import tpu as pltpu


def spatial_attention_kernel(hid_ref, enc_ref, edist_ref, wh_ref, we_ref,
                             b_ref, v_ref, reps_ref, gsel_ref, repc_ref,
                             out_ref):
    """One batch tile (TB elements) per grid step.

    hid_ref:   (TB, Hdec)     decoder hidden states                     (matmul dtype)
    enc_ref:   (TB*S, Henc)   encoder outputs, row index = b*S + s      (matmul dtype)
    edist_ref: (S, TB*C)      exp(-lambda*dist), lane-tiled, col-max 1  (f32)
    wh_ref:    (Hdec, Hdec)   attn weight rows acting on `hidden`       (matmul dtype)
    we_ref:    (Henc, Hdec)   attn weight rows acting on the encoder    (matmul dtype)
    b_ref:     (1, Hdec)      attn bias                                 (f32)
    v_ref:     (1, Hdec)      v weight as a row vector                  (f32)
    reps_ref:  (TB*S, TB)     one-hot: reps[b*S+s, b] = 1
    gsel_ref:  (S, TB*S)      one-hot: gsel[s, b*S+s] = 1
    repc_ref:  (TB, TB*C)     one-hot: repc[b, b*C+c] = 1
    out_ref:   (1, S, TB*C)   softmax over S, batch*channel packed along lanes
    """
    # energy = tanh(attn(cat(hidden_repeated, encoder_outputs)))
    # cat(...) @ W_attn == hidden @ W_h + enc @ W_e  (split along the input dim).
    e_h = jnp.dot(hid_ref[...], wh_ref[...],
                  preferred_element_type=jnp.float32) + b_ref[...]         # (TB, Hdec)
    e_e = jnp.dot(enc_ref[...], we_ref[...],
                  preferred_element_type=jnp.float32)                      # (TB*S, Hdec)
    # Repeat e_h over the S rows of its batch element via a one-hot MXU matmul
    # (replaces the unrolled per-batch loop of v2).
    e_full = e_e + jnp.dot(reps_ref[...], e_h,
                           preferred_element_type=jnp.float32)             # (TB*S, Hdec)
    energy = jnp.tanh(e_full)                                              # one EUP pass

    # v-projection (output width 1): VPU multiply + lane reduction (no N=1 MXU matmul).
    scores = jnp.sum(energy * v_ref[...], axis=-1, keepdims=True)          # (TB*S, 1)

    # Regroup flat scores (row b*S+s) into an (S, TB) block: mask by batch column,
    # then pick row s of each batch group — both on the MXU, no in-kernel reshape/T.
    scores_sb = jnp.dot(gsel_ref[...], scores * reps_ref[...],
                        preferred_element_type=jnp.float32)                # (S, TB)

    # softmax_S(score - lambda*dist) == exp(score - m_b) * exp(-lambda*dist) / sum_S(..)
    # The exp(-lambda*dist) factor is precomputed -> only S*TB exps per step.
    m = jnp.max(scores_sb, axis=0, keepdims=True)                          # (1, TB)
    ex = jnp.exp(scores_sb - m)                                            # (S, TB)
    # Lane-scatter each batch column to its C channel columns with a one-hot matmul.
    num = jnp.dot(ex, repc_ref[...],
                  preferred_element_type=jnp.float32) * edist_ref[...]     # (S, TB*C)
    denom = jnp.sum(num, axis=0, keepdims=True)                            # (1, TB*C)
    inv = pl.reciprocal(denom, approx=False)      # exact; one recip per column, not per row
    out_ref[0] = num * inv


def spatial_attention(hidden, encoder_outputs, distance_matrix,
                      w_attn, b_attn, v_w, lambda_param,
                      *, batch_tile=8, matmul_dtype=jnp.float32):
    """hidden: (B, Hdec), encoder_outputs: (B, S, Henc), distance_matrix: (S, C),
    w_attn: (Hdec+Henc, Hdec) in (in, out) layout, b_attn: (Hdec,), v_w: (Hdec, 1),
    lambda_param: scalar.  Returns attention weights of shape (B, S, C).

    batch_tile: batch elements per grid step.  Keep it a multiple of 8, pick it so
    batch_tile*C is a multiple of 128 (unmasked lane-dense stores), and pick it to
    divide B so the zero-pad fallback never copies encoder_outputs.
    matmul_dtype: dtype of the MXU operands (accumulation stays f32).  Use
    jnp.bfloat16 in production to halve the encoder-tile DMA / VMEM footprint.
    """
    B, S, Henc = encoder_outputs.shape
    Hdec = hidden.shape[1]
    C = distance_matrix.shape[1]
    f32 = jnp.float32
    mm = matmul_dtype

    TB = min(batch_tile, B)
    G = pl.cdiv(B, TB)
    B_pad = G * TB

    hidden = hidden.astype(mm)
    encoder_outputs = encoder_outputs.astype(mm)
    if B_pad != B:
        # Fallback only (prefer TB | B): padding re-materialises encoder_outputs in HBM.
        hidden = jnp.concatenate(
            [hidden, jnp.zeros((B_pad - B, Hdec), mm)], axis=0)
        encoder_outputs = jnp.concatenate(
            [encoder_outputs, jnp.zeros((B_pad - B, S, Henc), mm)], axis=0)

    # Split the attn weight: first Hdec input rows act on `hidden`, rest on the encoder.
    w_h = w_attn[:Hdec, :].astype(mm)                     # (Hdec, Hdec)
    w_e = w_attn[Hdec:, :].astype(mm)                     # (Henc, Hdec)
    b2 = b_attn.reshape(1, Hdec).astype(f32)              # (1, Hdec)
    v_row = v_w.reshape(1, Hdec).astype(f32)              # (1, Hdec)

    # exp(-lambda*dist), per-column shifted so its max is 1 (softmax shift-invariance),
    # lane-tiled TB times.  Absorbs lambda so no SMEM scalar / per-step multiply.
    lam_dist = jnp.asarray(lambda_param, f32) * distance_matrix.astype(f32)   # (S, C)
    lam_dist = lam_dist - jnp.min(lam_dist, axis=0, keepdims=True)
    edist_tiled = jnp.tile(jnp.exp(-lam_dist), (1, TB))                       # (S, TB*C)

    # One-hot helper matrices (grid-invariant, tiny).
    eye_tb = jnp.eye(TB, dtype=f32)
    reps = jnp.repeat(eye_tb, S, axis=0)                  # (TB*S, TB)
    gsel = jnp.tile(jnp.eye(S, dtype=f32), (1, TB))       # (S, TB*S)
    repc = jnp.repeat(eye_tb, C, axis=1)                  # (TB, TB*C)

    enc_flat = encoder_outputs.reshape(B_pad * S, Henc)   # row = b*S + s (zero-copy)
    TBC = TB * C

    # Explicit per-step VMEM budget: unlocks bigger-than-default tiles on v5e/v6e and
    # caps at 64 MiB so a v6e-sized tile cannot blow v7x's smaller VMEM.
    mm_bytes = jnp.dtype(mm).itemsize
    step_bytes = (
        2 * (TB * Hdec + TB * S * Henc) * mm_bytes        # double-buffered streamed inputs
        + 2 * S * TBC * 4                                 # double-buffered output block
        + 2 * (Hdec * Hdec + Henc * Hdec) * mm_bytes      # weights
        + 2 * (2 * Hdec + TB * S * TB + S * TB * S + TB * TBC + S * TBC) * 4)
    vmem_limit = int(min(64 * 2 ** 20, max(32 * 2 ** 20, 2 * step_bytes)))

    const = lambda i: (0, 0)
    grid_spec = pltpu.PrefetchScalarGridSpec(
        num_scalar_prefetch=0,
        grid=(G,),
        in_specs=[
            pl.BlockSpec((TB, Hdec), lambda i: (i, 0)),           # hidden tile
            pl.BlockSpec((TB * S, Henc), lambda i: (i, 0)),       # encoder tile (flat)
            # Grid-invariant inputs below never re-DMA.  (Production: add
            # pipeline_mode=pl.Buffered(1) to reclaim their second VMEM buffer.)
            pl.BlockSpec((S, TBC), const),                        # exp(-lambda*dist)
            pl.BlockSpec((Hdec, Hdec), const),                    # W_h
            pl.BlockSpec((Henc, Hdec), const),                    # W_e
            pl.BlockSpec((1, Hdec), const),                       # bias
            pl.BlockSpec((1, Hdec), const),                       # v row
            pl.BlockSpec((TB * S, TB), const),                    # reps one-hot
            pl.BlockSpec((S, TB * S), const),                     # gsel one-hot
            pl.BlockSpec((TB, TBC), const),                       # repc one-hot
        ],
        out_specs=pl.BlockSpec((1, S, TBC), lambda i: (i, 0, 0)),
    )

    out_packed = pl.pallas_call(
        spatial_attention_kernel,
        out_shape=jax.ShapeDtypeStruct((G, S, TBC), f32),
        grid_spec=grid_spec,
        compiler_params=pltpu.CompilerParams(
            dimension_semantics=("parallel",),    # batch tiles shard across v7x's 2 TCs
            vmem_limit_bytes=vmem_limit),
    )(hidden, enc_flat, edist_tiled, w_h, w_e, b2, v_row, reps, gsel, repc)

    # Unpack the lane-dense (G, S, TB*C) slab back to (B, S, C).  Keep this only because
    # C << 128 here; with production C >= 128 emit (B, S, C) directly from the kernel.
    out = (out_packed.reshape(G, S, TB, C)
           .transpose(0, 2, 1, 3)
           .reshape(B_pad, S, C))
    return out[:B]


def spatial_attention_ref(hidden, encoder_outputs, distance_matrix,
                          w_attn, b_attn, v_w, lambda_param):
    """Pure-JAX reference mirroring the PyTorch forward exactly."""
    B, S, _ = encoder_outputs.shape
    hid_rep = jnp.repeat(hidden[:, None, :], S, axis=1)                # (B, S, Hdec)
    cat = jnp.concatenate([hid_rep, encoder_outputs], axis=2)          # (B, S, Hdec+Henc)
    energy = jnp.tanh(cat @ w_attn + b_attn)                           # (B, S, Hdec)
    energy = (energy @ v_w)[..., 0]                                    # (B, S)
    C = distance_matrix.shape[1]
    energy = jnp.repeat(energy[:, :, None], C, axis=2)                 # (B, S, C)
    adjusted = energy - lambda_param * distance_matrix[None, :, :]     # (B, S, C)
    return jax.nn.softmax(adjusted, axis=1)


if __name__ == "__main__":
    # Small shapes consistent with the module's forward.  B=16 with batch_tile=8 gives a
    # 2-step grid (keeps both v7x TensorCores busy, no padding copy), TB*C = 128 keeps
    # output stores lane-dense/unmasked, and TB=8 satisfies the f32 sublane multiple.
    B = 16
    S = 8                   # nirs_seq_len (encoder_outputs seq dim)
    Henc = 32               # encoder_hidden_size
    Hdec = 32               # decoder_hidden_size
    C_eeg = 16              # eeg_channels (distance matrix columns)

    key = jax.random.PRNGKey(0)
    k1, k2, k3, k4, k5, k6 = jax.random.split(key, 6)

    hidden = jax.random.normal(k1, (B, Hdec), jnp.float32)
    encoder_outputs = jax.random.normal(k2, (B, S, Henc), jnp.float32)
    distance_matrix = jax.random.uniform(k3, (S, C_eeg), jnp.float32)

    # Synthetic parameters (shapes follow nn.Linear in the module):
    #   attn: Linear(Henc + Hdec -> Hdec) with bias; stored here as (in, out).
    #   v:    Linear(Hdec -> 1, bias=False); stored as (Hdec, 1).
    w_attn = jax.random.normal(k4, (Hdec + Henc, Hdec), jnp.float32) * 0.1
    b_attn = jax.random.normal(k5, (Hdec,), jnp.float32) * 0.1
    v_w = jax.random.normal(k6, (Hdec, 1), jnp.float32) * 0.1
    lambda_param = jnp.float32(1.0)

    ref = spatial_attention_ref(hidden, encoder_outputs, distance_matrix,
                                w_attn, b_attn, v_w, lambda_param)

    # f32 matmul path: tight check (validates the factorized softmax / one-hot matmuls).
    out_f32 = spatial_attention(hidden, encoder_outputs, distance_matrix,
                                w_attn, b_attn, v_w, lambda_param,
                                batch_tile=8, matmul_dtype=jnp.float32)
    out_f32 = jax.block_until_ready(out_f32)
    assert out_f32.shape == (B, S, C_eeg)
    assert jnp.allclose(out_f32, ref, atol=1e-5, rtol=1e-5), "f32 mismatch vs reference"

    # bf16 matmul path (production setting: halves the encoder DMA; f32 accumulation).
    out_bf16 = spatial_attention(hidden, encoder_outputs, distance_matrix,
                                 w_attn, b_attn, v_w, lambda_param,
                                 batch_tile=8, matmul_dtype=jnp.bfloat16)
    out_bf16 = jax.block_until_ready(out_bf16)
    assert out_bf16.shape == (B, S, C_eeg)
    assert jnp.allclose(out_bf16, ref, atol=1e-2, rtol=1e-2), "bf16 mismatch vs reference"

    print("KERNEL_OK")
</pallas_src>

<mosaic_0001>
module attributes {stable_mosaic.version = 11 : i64} {
  func.func @spatial_attention_kernel(%arg0: i32, %arg1: memref<8x32xf32, #tpu.memory_space<vmem>>, %arg2: memref<64x32xf32, #tpu.memory_space<vmem>>, %arg3: memref<8x128xf32, #tpu.memory_space<vmem>>, %arg4: memref<32x32xf32, #tpu.memory_space<vmem>>, %arg5: memref<32x32xf32, #tpu.memory_space<vmem>>, %arg6: memref<1x32xf32, #tpu.memory_space<vmem>>, %arg7: memref<1x32xf32, #tpu.memory_space<vmem>>, %arg8: memref<64x8xf32, #tpu.memory_space<vmem>>, %arg9: memref<8x64xf32, #tpu.memory_space<vmem>>, %arg10: memref<8x128xf32, #tpu.memory_space<vmem>>, %arg11: memref<1x8x128xf32, #tpu.memory_space<vmem>>) attributes {dimension_semantics = [#tpu.dimension_semantics<parallel>], iteration_bounds = array<i64: 2>, scalar_prefetch = 0 : i64, scratch_operands = 0 : i64, tpu.core_type = #tpu.core_type<tc>, window_params = [{transform_indices = @transform_0, window_bounds = array<i64: 8, 32>}, {transform_indices = @transform_1, window_bounds = array<i64: 64, 32>}, {pipeline_mode = #tpu.pipeline_mode<synchronous>, transform_indices = @transform_2, window_bounds = array<i64: 8, 128>}, {pipeline_mode = #tpu.pipeline_mode<synchronous>, transform_indices = @transform_3, window_bounds = array<i64: 32, 32>}, {pipeline_mode = #tpu.pipeline_mode<synchronous>, transform_indices = @transform_4, window_bounds = array<i64: 32, 32>}, {pipeline_mode = #tpu.pipeline_mode<synchronous>, transform_indices = @transform_5, window_bounds = array<i64: 1, 32>}, {pipeline_mode = #tpu.pipeline_mode<synchronous>, transform_indices = @transform_6, window_bounds = array<i64: 1, 32>}, {pipeline_mode = #tpu.pipeline_mode<synchronous>, transform_indices = @transform_7, window_bounds = array<i64: 64, 8>}, {pipeline_mode = #tpu.pipeline_mode<synchronous>, transform_indices = @transform_8, window_bounds = array<i64: 8, 64>}, {pipeline_mode = #tpu.pipeline_mode<synchronous>, transform_indices = @transform_9, window_bounds = array<i64: 8, 128>}, {transform_indices = @transform_10, window_bounds = array<i64: 1, 8, 128>}]} {
    %c0 = arith.constant 0 : index
    %c0_0 = arith.constant 0 : index
    %0 = vector.load %arg1[%c0, %c0_0] : memref<8x32xf32, #tpu.memory_space<vmem>>, vector<8x32xf32>
    %c0_1 = arith.constant 0 : index
    %c0_2 = arith.constant 0 : index
    %1 = vector.load %arg4[%c0_1, %c0_2] : memref<32x32xf32, #tpu.memory_space<vmem>>, vector<32x32xf32>
    %cst = arith.constant dense<0.000000e+00> : vector<8x32xf32>
    %2 = tpu.matmul %0, %1, %cst {dimension_numbers = #tpu.dot_dimension_numbers<[1], [0], [0], [1], [0, 0, 1, 1], [], []>} : vector<8x32xf32>, vector<32x32xf32>, vector<8x32xf32> -> vector<8x32xf32>
    %c0_3 = arith.constant 0 : index
    %c0_4 = arith.constant 0 : index
    %3 = vector.load %arg6[%c0_3, %c0_4] : memref<1x32xf32, #tpu.memory_space<vmem>>, vector<1x32xf32>
    %4 = vector.broadcast %3 : vector<1x32xf32> to vector<8x32xf32>
    %5 = arith.addf %2, %4 : vector<8x32xf32>
    %c0_5 = arith.constant 0 : index
    %c0_6 = arith.constant 0 : index
    %6 = vector.load %arg2[%c0_5, %c0_6] : memref<64x32xf32, #tpu.memory_space<vmem>>, vector<64x32xf32>
    %c0_7 = arith.constant 0 : index
    %c0_8 = arith.constant 0 : index
    %7 = vector.load %arg5[%c0_7, %c0_8] : memref<32x32xf32, #tpu.memory_space<vmem>>, vector<32x32xf32>
    %cst_9 = arith.constant dense<0.000000e+00> : vector<64x32xf32>
    %8 = tpu.matmul %6, %7, %cst_9 {dimension_numbers = #tpu.dot_dimension_numbers<[1], [0], [0], [1], [0, 0, 1, 1], [], []>} : vector<64x32xf32>, vector<32x32xf32>, vector<64x32xf32> -> vector<64x32xf32>
    %c0_10 = arith.constant 0 : index
    %c0_11 = arith.constant 0 : index
    %9 = vector.load %arg8[%c0_10, %c0_11] : memref<64x8xf32, #tpu.memory_space<vmem>>, vector<64x8xf32>
    %cst_12 = arith.constant dense<0.000000e+00> : vector<64x32xf32>
    %10 = tpu.matmul %9, %5, %cst_12 {dimension_numbers = #tpu.dot_dimension_numbers<[1], [0], [0], [1], [0, 0, 1, 1], [], []>} : vector<64x8xf32>, vector<8x32xf32>, vector<64x32xf32> -> vector<64x32xf32>
    %11 = arith.addf %8, %10 : vector<64x32xf32>
    %12 = math.tanh %11 : vector<64x32xf32>
    %c0_13 = arith.constant 0 : index
    %c0_14 = arith.constant 0 : index
    %13 = vector.load %arg7[%c0_13, %c0_14] : memref<1x32xf32, #tpu.memory_space<vmem>>, vector<1x32xf32>
    %14 = vector.broadcast %13 : vector<1x32xf32> to vector<64x32xf32>
    %15 = arith.mulf %12, %14 : vector<64x32xf32>
    %cst_15 = arith.constant dense<0.000000e+00> : vector<64xf32>
    %16 = vector.multi_reduction <add>, %15, %cst_15 [1] : vector<64x32xf32> to vector<64xf32>
    %17 = vector.shape_cast %16 : vector<64xf32> to vector<64x1xf32>
    %c0_16 = arith.constant 0 : index
    %c0_17 = arith.constant 0 : index
    %18 = vector.load %arg9[%c0_16, %c0_17] : memref<8x64xf32, #tpu.memory_space<vmem>>, vector<8x64xf32>
    %c0_18 = arith.constant 0 : index
    %c0_19 = arith.constant 0 : index
    %19 = vector.load %arg8[%c0_18, %c0_19] : memref<64x8xf32, #tpu.memory_space<vmem>>, vector<64x8xf32>
    %20 = vector.broadcast %17 : vector<64x1xf32> to vector<64x8xf32>
    %21 = arith.mulf %20, %19 : vector<64x8xf32>
    %cst_20 = arith.constant dense<0.000000e+00> : vector<8x8xf32>
    %22 = tpu.matmul %18, %21, %cst_20 {dimension_numbers = #tpu.dot_dimension_numbers<[1], [0], [0], [1], [0, 0, 1, 1], [], []>} : vector<8x64xf32>, vector<64x8xf32>, vector<8x8xf32> -> vector<8x8xf32>
    %cst_21 = arith.constant dense<0xFF800000> : vector<8xf32>
    %23 = vector.multi_reduction <maximumf>, %22, %cst_21 [0] : vector<8x8xf32> to vector<8xf32>
    %24 = vector.shape_cast %23 : vector<8xf32> to vector<1x8xf32>
    %25 = vector.broadcast %24 : vector<1x8xf32> to vector<8x8xf32>
    %26 = arith.subf %22, %25 : vector<8x8xf32>
    %27 = math.exp %26 : vector<8x8xf32>
    %c0_22 = arith.constant 0 : index
    %c0_23 = arith.constant 0 : index
    %28 = vector.load %arg10[%c0_22, %c0_23] : memref<8x128xf32, #tpu.memory_space<vmem>>, vector<8x128xf32>
    %cst_24 = arith.constant dense<0.000000e+00> : vector<8x128xf32>
    %29 = tpu.matmul %27, %28, %cst_24 {dimension_numbers = #tpu.dot_dimension_numbers<[1], [0], [0], [1], [0, 0, 1, 1], [], []>} : vector<8x8xf32>, vector<8x128xf32>, vector<8x128xf32> -> vector<8x128xf32>
    %c0_25 = arith.constant 0 : index
    %c0_26 = arith.constant 0 : index
    %30 = vector.load %arg3[%c0_25, %c0_26] : memref<8x128xf32, #tpu.memory_space<vmem>>, vector<8x128xf32>
    %31 = arith.mulf %29, %30 : vector<8x128xf32>
    %cst_27 = arith.constant dense<0.000000e+00> : vector<128xf32>
    %32 = vector.multi_reduction <add>, %31, %cst_27 [0] : vector<8x128xf32> to vector<128xf32>
    %33 = vector.shape_cast %32 : vector<128xf32> to vector<1x128xf32>
    %34 = tpu.reciprocal %33 : vector<1x128xf32> -> vector<1x128xf32>
    %35 = vector.broadcast %34 : vector<1x128xf32> to vector<8x128xf32>
    %36 = arith.mulf %31, %35 : vector<8x128xf32>
    %c0_28 = arith.constant 0 : index
    %c0_29 = arith.constant 0 : index
    %c0_30 = arith.constant 0 : index
    %37 = vector.load %arg11[%c0_28, %c0_29, %c0_30] : memref<1x8x128xf32, #tpu.memory_space<vmem>>, vector<1x8x128xf32>
    %38 = vector.shape_cast %37 : vector<1x8x128xf32> to vector<8x128xf32>
    %39 = vector.shape_cast %36 : vector<8x128xf32> to vector<1x8x128xf32>
    tpu.vector_store %arg11[%c0_28, %c0_29, %c0_30], %39 {strides = array<i32>} : memref<1x8x128xf32, #tpu.memory_space<vmem>>, vector<1x8x128xf32>,
    return
  }
  func.func @transform_0(%arg0: i32) -> (i32, i32) {
    %c0_i32 = arith.constant 0 : i32
    %c0_i32_0 = arith.constant 0 : i32
    return %arg0, %c0_i32 : i32, i32
  }
  func.func @transform_1(%arg0: i32) -> (i32, i32) {
    %c0_i32 = arith.constant 0 : i32
    %c0_i32_0 = arith.constant 0 : i32
    return %arg0, %c0_i32 : i32, i32
  }
  func.func @transform_2(%arg0: i32) -> (i32, i32) {
    %c0_i32 = arith.constant 0 : i32
    %c0_i32_0 = arith.constant 0 : i32
    %c0_i32_1 = arith.constant 0 : i32
    return %c0_i32, %c0_i32_0 : i32, i32
  }
  func.func @transform_3(%arg0: i32) -> (i32, i32) {
    %c0_i32 = arith.constant 0 : i32
    %c0_i32_0 = arith.constant 0 : i32
    %c0_i32_1 = arith.constant 0 : i32
    return %c0_i32, %c0_i32_0 : i32, i32
  }
  func.func @transform_4(%arg0: i32) -> (i32, i32) {
    %c0_i32 = arith.constant 0 : i32
    %c0_i32_0 = arith.constant 0 : i32
    %c0_i32_1 = arith.constant 0 : i32
    return %c0_i32, %c0_i32_0 : i32, i32
  }
  func.func @transform_5(%arg0: i32) -> (i32, i32) {
    %c0_i32 = arith.constant 0 : i32
    %c0_i32_0 = arith.constant 0 : i32
    %c0_i32_1 = arith.constant 0 : i32
    return %c0_i32, %c0_i32_0 : i32, i32
  }
  func.func @transform_6(%arg0: i32) -> (i32, i32) {
    %c0_i32 = arith.constant 0 : i32
    %c0_i32_0 = arith.constant 0 : i32
    %c0_i32_1 = arith.constant 0 : i32
    return %c0_i32, %c0_i32_0 : i32, i32
  }
  func.func @transform_7(%arg0: i32) -> (i32, i32) {
    %c0_i32 = arith.constant 0 : i32
    %c0_i32_0 = arith.constant 0 : i32
    %c0_i32_1 = arith.constant 0 : i32
    return %c0_i32, %c0_i32_0 : i32, i32
  }
  func.func @transform_8(%arg0: i32) -> (i32, i32) {
    %c0_i32 = arith.constant 0 : i32
    %c0_i32_0 = arith.constant 0 : i32
    %c0_i32_1 = arith.constant 0 : i32
    return %c0_i32, %c0_i32_0 : i32, i32
  }
  func.func @transform_9(%arg0: i32) -> (i32, i32) {
    %c0_i32 = arith.constant 0 : i32
    %c0_i32_0 = arith.constant 0 : i32
    %c0_i32_1 = arith.constant 0 : i32
    return %c0_i32, %c0_i32_0 : i32, i32
  }
  func.func @transform_10(%arg0: i32) -> (i32, i32, i32) {
    %c0_i32 = arith.constant 0 : i32
    %c0_i32_0 = arith.constant 0 : i32
    %c0_i32_1 = arith.constant 0 : i32
    return %arg0, %c0_i32, %c0_i32_0 : i32, i32, i32
  }
}

</mosaic_0001>

<llo_original>
// kernel: tpu_custom_call.1
$region0: #{tpu_custom_call.1}
  #allocation0 [shape = 'u32[]', space=smem, size = 0x4, offset = 0x4, fixed_abs, tag = 'smem constant byte address 0x4 - core index']
  #allocation1 [shape = 'u32[72,128]{1,0:T(1,128)}', space=vmem, size = 0x9000, scoped, tag = 'internal scratch']
  %s0 = inlined_call_operand.vmem [shape: f32[16,32], index: 0, kind: input, shape index: {}]
  %s1 = inlined_call_operand.vmem [shape: f32[128,32], index: 1, kind: input, shape index: {}]
  %s2 = inlined_call_operand.vmem [shape: f32[8,128], index: 2, kind: input, shape index: {}]
  %s3 = inlined_call_operand.vmem [shape: f32[32,32], index: 3, kind: input, shape index: {}]
  %s4 = inlined_call_operand.vmem [shape: f32[32,32], index: 4, kind: input, shape index: {}]
  %s5 = inlined_call_operand.vmem [shape: f32[1,32], index: 5, kind: input, shape index: {}]
  %s6 = inlined_call_operand.vmem [shape: f32[1,32], index: 6, kind: input, shape index: {}]
  %s7 = inlined_call_operand.vmem [shape: f32[64,8], index: 7, kind: input, shape index: {}]
  %s8 = inlined_call_operand.vmem [shape: f32[8,64], index: 8, kind: input, shape index: {}]
  %s9 = inlined_call_operand.vmem [shape: f32[8,128], index: 9, kind: input, shape index: {}]
  %s10 = inlined_call_operand.hbm [shape: f32[2,8,128], index: 10, kind: output, shape index: {}]
  %s11 = sld [smem:[#allocation0]]
  $region73: #{tpu_custom_call.1} parent=0
    _
  %s13 = ssub.s32 1, %s11
  %s14 = scalar_select 0, %s13, %s11
  $region1: #{tpu_custom_call.1} parent=0
    #allocation2 [shape = 'u8[8192]{0}', space=vmem, size = 0x2000, scoped, tag = 'output window, operand 0']
    #allocation3 [shape = 's32[2]{0}', space=sflag, size = 0x8, scoped, tag = 'scoped memory for tpu_custom_call.1']
    %15 = vsyncpa [#allocation3], 0
    %s16 = scalar_lea.sflag [#allocation3], 1
    %17 = vsyncpa %s16, 0
    loop: start=0, step=1, limit=4
    $region2: #{tpu_custom_call.1} parent=1 // loop_pre_header
      _
    $region3: #{tpu_custom_call.1} parent=1 // loop_header
      %s19 = sphi 0, %s23
      %p20 = scmp.ge.s32.totalorder %s19, 4
      %s29 = sphi 0, %s31
      %s32 = sphi 0, %s29
      %s33 = sphi 0, %s32
      %s49 = sphi 0, %s33
      %s55 = sphi 0, %s57
      %s58 = sphi 0, %s55
      %s59 = sphi 0, %s58
      %s75 = sphi 0, %s59
      %s79 = sphi 0, %s79
      %s81 = sphi 0, %s79
      %s82 = sphi 0, %s81
      %s96 = sphi 0, %s82
      %s100 = sphi 0, %s100
      %s102 = sphi 0, %s100
      %s103 = sphi 0, %s102
      %s117 = sphi 0, %s103
      %s121 = sphi 0, %s121
      %s123 = sphi 0, %s121
      %s124 = sphi 0, %s123
      %s138 = sphi 0, %s124
      %s142 = sphi 0, %s142
      %s144 = sphi 0, %s142
      %s145 = sphi 0, %s144
      %s159 = sphi 0, %s145
      %s163 = sphi 0, %s163
      %s165 = sphi 0, %s163
      %s166 = sphi 0, %s165
      %s180 = sphi 0, %s166
      %s184 = sphi 0, %s184
      %s186 = sphi 0, %s184
      %s187 = sphi 0, %s186
      %s201 = sphi 0, %s187
      %s205 = sphi 0, %s205
      %s207 = sphi 0, %s205
      %s208 = sphi 0, %s207
      %s222 = sphi 0, %s208
      %s226 = sphi 0, %s226
      %s228 = sphi 0, %s226
      %s229 = sphi 0, %s228
      %s243 = sphi 0, %s229
      %s249 = sphi 0, %s251
      %s252 = sphi 0, %s249
      %s253 = sphi 0, %s252
      %s269 = sphi 0, %s253
    $region4: #{tpu_custom_call.1} parent=1 // loop_header_branch
      %22 = sbr.rel (%p20) target = $region8
    $region5: #{tpu_custom_call.1} parent=1 // loop_body
      %s24 = ssub.s32 %s19, 1
      %s25 = ssub.s32 %s19, 2
      %s26 = sadd.s32 %s19, 1
      %s27 = ssub.s32 %s19, %s26
      %p28 = scmp.eq.s32.totalorder %s27, 0
      %s30 = sadd.s32 %s29, 1
      %s31 = scalar_select %p28, %s29, %s30
      %p34 = pneg %p28
      %p35 = scmp.eq.s32.totalorder %s19, 1
      %p36 = por %p34, %p35
      %p37 = scmp.ne.s32.totalorder %s29, %s32
      %p38 = scmp.eq.s32.totalorder %s19, 0
      %p39 = por %p37, %p38
      %p40 = scmp.ne.s32.totalorder %s29, %s32
      %p41 = scmp.eq.s32.totalorder %s24, 1
      %p42 = por %p40, %p41
      %p43 = scmp.ne.s32.totalorder %s32, %s33
      %p44 = scmp.eq.s32.totalorder %s24, 0
      %p45 = por %p43, %p44
      %p46 = scmp.ne.s32.totalorder %s32, %s33
      %p47 = scmp.eq.s32.totalorder %s25, 1
      %p48 = por %p46, %p47
      %p50 = scmp.ne.s32.totalorder %s33, %s49
      %p51 = scmp.eq.s32.totalorder %s25, 0
      %p52 = por %p50, %p51
      %s53 = ssub.s32 %s19, %s26
      %p54 = scmp.eq.s32.totalorder %s53, 0
      %s56 = sadd.s32 %s55, 1
      %s57 = scalar_select %p54, %s55, %s56
      %p60 = pneg %p54
      %p61 = scmp.eq.s32.totalorder %s19, 1
      %p62 = por %p60, %p61
      %p63 = scmp.ne.s32.totalorder %s55, %s58
      %p64 = scmp.eq.s32.totalorder %s19, 0
      %p65 = por %p63, %p64
      %p66 = scmp.ne.s32.totalorder %s55, %s58
      %p67 = scmp.eq.s32.totalorder %s24, 1
      %p68 = por %p66, %p67
      %p69 = scmp.ne.s32.totalorder %s58, %s59
      %p70 = scmp.eq.s32.totalorder %s24, 0
      %p71 = por %p69, %p70
      %p72 = scmp.ne.s32.totalorder %s58, %s59
      %p73 = scmp.eq.s32.totalorder %s25, 1
      %p74 = por %p72, %p73
      %p76 = scmp.ne.s32.totalorder %s59, %s75
      %p77 = scmp.eq.s32.totalorder %s25, 0
      %p78 = por %p76, %p77
      %s80 = sadd.s32 %s79, 1
      %p83 = scmp.eq.s32.totalorder %s19, 1
      %p84 = scmp.ne.s32.totalorder %s79, %s81
      %p85 = scmp.eq.s32.totalorder %s19, 0
      %p86 = por %p84, %p85
      %p87 = scmp.ne.s32.totalorder %s79, %s81
      %p88 = scmp.eq.s32.totalorder %s24, 1
      %p89 = por %p87, %p88
      %p90 = scmp.ne.s32.totalorder %s81, %s82
      %p91 = scmp.eq.s32.totalorder %s24, 0
      %p92 = por %p90, %p91
      %p93 = scmp.ne.s32.totalorder %s81, %s82
      %p94 = scmp.eq.s32.totalorder %s25, 1
      %p95 = por %p93, %p94
      %p97 = scmp.ne.s32.totalorder %s82, %s96
      %p98 = scmp.eq.s32.totalorder %s25, 0
      %p99 = por %p97, %p98
      %s101 = sadd.s32 %s100, 1
      %p104 = scmp.eq.s32.totalorder %s19, 1
      %p105 = scmp.ne.s32.totalorder %s100, %s102
      %p106 = scmp.eq.s32.totalorder %s19, 0
      %p107 = por %p105, %p106
      %p108 = scmp.ne.s32.totalorder %s100, %s102
      %p109 = scmp.eq.s32.totalorder %s24, 1
      %p110 = por %p108, %p109
      %p111 = scmp.ne.s32.totalorder %s102, %s103
      %p112 = scmp.eq.s32.totalorder %s24, 0
      %p113 = por %p111, %p112
      %p114 = scmp.ne.s32.totalorder %s102, %s103
      %p115 = scmp.eq.s32.totalorder %s25, 1
      %p116 = por %p114, %p115
      %p118 = scmp.ne.s32.totalorder %s103, %s117
      %p119 = scmp.eq.s32.totalorder %s25, 0
      %p120 = por %p118, %p119
      %s122 = sadd.s32 %s121, 1
      %p125 = scmp.eq.s32.totalorder %s19, 1
      %p126 = scmp.ne.s32.totalorder %s121, %s123
      %p127 = scmp.eq.s32.totalorder %s19, 0
      %p128 = por %p126, %p127
      %p129 = scmp.ne.s32.totalorder %s121, %s123
      %p130 = scmp.eq.s32.totalorder %s24, 1
      %p131 = por %p129, %p130
      %p132 = scmp.ne.s32.totalorder %s123, %s124
      %p133 = scmp.eq.s32.totalorder %s24, 0
      %p134 = por %p132, %p133
      %p135 = scmp.ne.s32.totalorder %s123, %s124
      %p136 = scmp.eq.s32.totalorder %s25, 1
      %p137 = por %p135, %p136
      %p139 = scmp.ne.s32.totalorder %s124, %s138
      %p140 = scmp.eq.s32.totalorder %s25, 0
      %p141 = por %p139, %p140
      %s143 = sadd.s32 %s142, 1
      %p146 = scmp.eq.s32.totalorder %s19, 1
      %p147 = scmp.ne.s32.totalorder %s142, %s144
      %p148 = scmp.eq.s32.totalorder %s19, 0
      %p149 = por %p147, %p148
      %p150 = scmp.ne.s32.totalorder %s142, %s144
      %p151 = scmp.eq.s32.totalorder %s24, 1
      %p152 = por %p150, %p151
      %p153 = scmp.ne.s32.totalorder %s144, %s145
      %p154 = scmp.eq.s32.totalorder %s24, 0
      %p155 = por %p153, %p154
      %p156 = scmp.ne.s32.totalorder %s144, %s145
      %p157 = scmp.eq.s32.totalorder %s25, 1
      %p158 = por %p156, %p157
      %p160 = scmp.ne.s32.totalorder %s145, %s159
      %p161 = scmp.eq.s32.totalorder %s25, 0
      %p162 = por %p160, %p161
      %s164 = sadd.s32 %s163, 1
      %p167 = scmp.eq.s32.totalorder %s19, 1
      %p168 = scmp.ne.s32.totalorder %s163, %s165
      %p169 = scmp.eq.s32.totalorder %s19, 0
      %p170 = por %p168, %p169
      %p171 = scmp.ne.s32.totalorder %s163, %s165
      %p172 = scmp.eq.s32.totalorder %s24, 1
      %p173 = por %p171, %p172
      %p174 = scmp.ne.s32.totalorder %s165, %s166
      %p175 = scmp.eq.s32.totalorder %s24, 0
      %p176 = por %p174, %p175
      %p177 = scmp.ne.s32.totalorder %s165, %s166
      %p178 = scmp.eq.s32.totalorder %s25, 1
      %p179 = por %p177, %p178
      %p181 = scmp.ne.s32.totalorder %s166, %s180
      %p182 = scmp.eq.s32.totalorder %s25, 0
      %p183 = por %p181, %p182
      %s185 = sadd.s32 %s184, 1
      %p188 = scmp.eq.s32.totalorder %s19, 1
      %p189 = scmp.ne.s32.totalorder %s184, %s186
      %p190 = scmp.eq.s32.totalorder %s19, 0
      %p191 = por %p189, %p190
      %p192 = scmp.ne.s32.totalorder %s184, %s186
      %p193 = scmp.eq.s32.totalorder %s24, 1
      %p194 = por %p192, %p193
      %p195 = scmp.ne.s32.totalorder %s186, %s187
      %p196 = scmp.eq.s32.totalorder %s24, 0
      %p197 = por %p195, %p196
      %p198 = scmp.ne.s32.totalorder %s186, %s187
      %p199 = scmp.eq.s32.totalorder %s25, 1
      %p200 = por %p198, %p199
      %p202 = scmp.ne.s32.totalorder %s187, %s201
      %p203 = scmp.eq.s32.totalorder %s25, 0
      %p204 = por %p202, %p203
      %s206 = sadd.s32 %s205, 1
      %p209 = scmp.eq.s32.totalorder %s19, 1
      %p210 = scmp.ne.s32.totalorder %s205, %s207
      %p211 = scmp.eq.s32.totalorder %s19, 0
      %p212 = por %p210, %p211
      %p213 = scmp.ne.s32.totalorder %s205, %s207
      %p214 = scmp.eq.s32.totalorder %s24, 1
      %p215 = por %p213, %p214
      %p216 = scmp.ne.s32.totalorder %s207, %s208
      %p217 = scmp.eq.s32.totalorder %s24, 0
      %p218 = por %p216, %p217
      %p219 = scmp.ne.s32.totalorder %s207, %s208
      %p220 = scmp.eq.s32.totalorder %s25, 1
      %p221 = por %p219, %p220
      %p223 = scmp.ne.s32.totalorder %s208, %s222
      %p224 = scmp.eq.s32.totalorder %s25, 0
      %p225 = por %p223, %p224
      %s227 = sadd.s32 %s226, 1
      %p230 = scmp.eq.s32.totalorder %s19, 1
      %p231 = scmp.ne.s32.totalorder %s226, %s228
      %p232 = scmp.eq.s32.totalorder %s19, 0
      %p233 = por %p231, %p232
      %p234 = scmp.ne.s32.totalorder %s226, %s228
      %p235 = scmp.eq.s32.totalorder %s24, 1
      %p236 = por %p234, %p235
      %p237 = scmp.ne.s32.totalorder %s228, %s229
      %p238 = scmp.eq.s32.totalorder %s24, 0
      %p239 = por %p237, %p238
      %p240 = scmp.ne.s32.totalorder %s228, %s229
      %p241 = scmp.eq.s32.totalorder %s25, 1
      %p242 = por %p240, %p241
      %p244 = scmp.ne.s32.totalorder %s229, %s243
      %p245 = scmp.eq.s32.totalorder %s25, 0
      %p246 = por %p244, %p245
      %s247 = ssub.s32 %s19, %s26
      %p248 = scmp.eq.s32.totalorder %s247, 0
      %s250 = sadd.s32 %s249, 1
      %s251 = scalar_select %p248, %s249, %s250
      %p254 = pneg %p248
      %p255 = scmp.eq.s32.totalorder %s19, 1
      %p256 = por %p254, %p255
      %p257 = scmp.ne.s32.totalorder %s249, %s252
      %p258 = scmp.eq.s32.totalorder %s19, 0
      %p259 = por %p257, %p258
      %p260 = scmp.ne.s32.totalorder %s249, %s252
      %p261 = scmp.eq.s32.totalorder %s24, 1
      %p262 = por %p260, %p261
      %p263 = scmp.ne.s32.totalorder %s252, %s253
      %p264 = scmp.eq.s32.totalorder %s24, 0
      %p265 = por %p263, %p264
      %p266 = scmp.ne.s32.totalorder %s252, %s253
      %p267 = scmp.eq.s32.totalorder %s25, 1
      %p268 = por %p266, %p267
      %p270 = scmp.ne.s32.totalorder %s253, %s269
      %p271 = scmp.eq.s32.totalorder %s25, 0
      %p272 = por %p270, %p271
      %p273 = scmp.le.s32.totalorder 1, %s19
      %p274 = scmp.lt.s32.totalorder %s19, 3
      %p275 = pnand %p273, %p274
      %p276 = pneg %p275
      // Predicated region
      $region9: #{tpu_custom_call.1} parent=5 // pred_check
        _
      $region10: #{tpu_custom_call.1} parent=5 // pred_check_branch
        %278 = sbr.rel (%p275) target = $region12
      $region11: #{tpu_custom_call.1} parent=5 // pred_region
        %s279 = ssub.s32 %s19, 1
        // Predicated region
        $region13: #{tpu_custom_call.1} parent=11 // pred_check
          %p280 = pneg %p92
        $region14: #{tpu_custom_call.1} parent=11 // pred_check_branch
          %282 = sbr.rel (%p280) target = $region16
        $region15: #{tpu_custom_call.1} parent=11 // pred_region
          _
        $region16: #{tpu_custom_call.1} parent=11 // pred_fallthru
          _
        // Predicated region
        $region17: #{tpu_custom_call.1} parent=11 // pred_check
          %p283 = pneg %p113
        $region18: #{tpu_custom_call.1} parent=11 // pred_check_branch
          %285 = sbr.rel (%p283) target = $region20
        $region19: #{tpu_custom_call.1} parent=11 // pred_region
          _
        $region20: #{tpu_custom_call.1} parent=11 // pred_fallthru
          _
        // Predicated region
        $region21: #{tpu_custom_call.1} parent=11 // pred_check
          %p286 = pneg %p134
        $region22: #{tpu_custom_call.1} parent=11 // pred_check_branch
          %288 = sbr.rel (%p286) target = $region24
        $region23: #{tpu_custom_call.1} parent=11 // pred_region
          _
        $region24: #{tpu_custom_call.1} parent=11 // pred_fallthru
          _
        // Predicated region
        $region25: #{tpu_custom_call.1} parent=11 // pred_check
          %p289 = pneg %p155
        $region26: #{tpu_custom_call.1} parent=11 // pred_check_branch
          %291 = sbr.rel (%p289) target = $region28
        $region27: #{tpu_custom_call.1} parent=11 // pred_region
          _
        $region28: #{tpu_custom_call.1} parent=11 // pred_fallthru
          _
        // Predicated region
        $region29: #{tpu_custom_call.1} parent=11 // pred_check
          %p292 = pneg %p176
        $region30: #{tpu_custom_call.1} parent=11 // pred_check_branch
          %294 = sbr.rel (%p292) target = $region32
        $region31: #{tpu_custom_call.1} parent=11 // pred_region
          _
        $region32: #{tpu_custom_call.1} parent=11 // pred_fallthru
          _
        // Predicated region
        $region33: #{tpu_custom_call.1} parent=11 // pred_check
          %p295 = pneg %p197
        $region34: #{tpu_custom_call.1} parent=11 // pred_check_branch
          %297 = sbr.rel (%p295) target = $region36
        $region35: #{tpu_custom_call.1} parent=11 // pred_region
          _
        $region36: #{tpu_custom_call.1} parent=11 // pred_fallthru
          _
        // Predicated region
        $region37: #{tpu_custom_call.1} parent=11 // pred_check
          %p298 = pneg %p218
        $region38: #{tpu_custom_call.1} parent=11 // pred_check_branch
          %300 = sbr.rel (%p298) target = $region40
        $region39: #{tpu_custom_call.1} parent=11 // pred_region
          _
        $region40: #{tpu_custom_call.1} parent=11 // pred_fallthru
          _
        // Predicated region
        $region41: #{tpu_custom_call.1} parent=11 // pred_check
          %p301 = pneg %p239
        $region42: #{tpu_custom_call.1} parent=11 // pred_check_branch
          %303 = sbr.rel (%p301) target = $region44
        $region43: #{tpu_custom_call.1} parent=11 // pred_region
          _
        $region44: #{tpu_custom_call.1} parent=11 // pred_fallthru
          _
      $region12: #{tpu_custom_call.1} parent=5 // pred_fallthru
        _
      %p304 = scmp.lt.s32.totalorder %s19, 2
      // Predicated region
      $region45: #{tpu_custom_call.1} parent=5 // pred_check
        %p305 = pneg %p304
      $region46: #{tpu_custom_call.1} parent=5 // pred_check_branch
        %307 = sbr.rel (%p305) target = $region48
      $region47: #{tpu_custom_call.1} parent=5 // pred_region
        // Predicated region
        $region49: #{tpu_custom_call.1} parent=47 // pred_check
          %p308 = pneg %p39
        $region50: #{tpu_custom_call.1} parent=47 // pred_check_branch
          %310 = sbr.rel (%p308) target = $region52
        $region51: #{tpu_custom_call.1} parent=47 // pred_region
          %p311 = scmp.lt.s32.totalorder %s19, 1
          %s312 = scalar_select %p311, %s19, 1
          %s313 = smul.addr %s312, 8
          %s314 = scalar_lea.vmem %s0, %s313
        $region52: #{tpu_custom_call.1} parent=47 // pred_fallthru
          _
        // Predicated region
        $region53: #{tpu_custom_call.1} parent=47 // pred_check
          %p315 = pneg %p65
        $region54: #{tpu_custom_call.1} parent=47 // pred_check_branch
          %317 = sbr.rel (%p315) target = $region56
        $region55: #{tpu_custom_call.1} parent=47 // pred_region
          %s318 = smul.u32 8, %s19
          %p319 = scmp.lt.s32.totalorder %s318, 15
          %s320 = scalar_select %p319, %s318, 15
          %s321 = smul.addr %s320, 8
          %s322 = scalar_lea.vmem %s1, %s321
          %s323 = smul.u32 8, %s19
        $region56: #{tpu_custom_call.1} parent=47 // pred_fallthru
          _
      $region48: #{tpu_custom_call.1} parent=5 // pred_fallthru
        _
      %p324 = scmp.le.s32.totalorder 1, %s19
      %p325 = scmp.lt.s32.totalorder %s19, 3
      %p326 = pnand %p324, %p325
      %p327 = pneg %p326
      // Predicated region
      $region57: #{tpu_custom_call.1} parent=5 // pred_check
        _
      $region58: #{tpu_custom_call.1} parent=5 // pred_check_branch
        %329 = sbr.rel (%p326) target = $region60
      $region59: #{tpu_custom_call.1} parent=5 // pred_region
        %s330 = ssub.s32 %s19, 1
        %p331 = scmp.lt.s32.totalorder %s24, 1
        %s332 = scalar_select %p331, %s24, 1
        %s333 = smul.addr %s332, 8
        %s334 = scalar_lea.vmem %s0, %s333
        %p335 = pneg %p45
        %p336 = pneg %p42
        %s337 = smul.u32 8, %s24
        %p338 = scmp.lt.s32.totalorder %s337, 15
        %s339 = scalar_select %p338, %s337, 15
        %s340 = smul.addr %s339, 8
        %s341 = scalar_lea.vmem %s1, %s340
        %p342 = pneg %p71
        %p343 = pneg %p68
        %p344 = pneg %p92
        %p345 = pneg %p89
        %p346 = pneg %p113
        %p347 = pneg %p110
        %p348 = pneg %p134
        %p349 = pneg %p131
        %p350 = pneg %p155
        %p351 = pneg %p152
        %p352 = pneg %p176
        %p353 = pneg %p173
        %p354 = pneg %p197
        %p355 = pneg %p194
        %p356 = pneg %p218
        %p357 = pneg %p215
        %p358 = pneg %p239
        %p359 = pneg %p236
        %p360 = pneg %p265
        %p361 = pneg %p262
        %s362 = sand.u32 %s252, 1
        %s363 = scalar_lea.sflag [#allocation3], %s362
        %s364 = sand.u32 %s252, 1
        %s365 = smul.addr %s364, 8
        %s366 = scalar_lea.vmem [#allocation2], %s365
        %p367 = scmp.lt.s32.totalorder %s24, 1
        %s368 = scalar_select %p367, %s24, 1
        %s369 = smul.addr %s368, 8
        %s370 = scalar_lea.vmem %s0, %s369
        %s371 = smul.u32 8, %s24
        %p372 = scmp.lt.s32.totalorder %s371, 15
        %s373 = scalar_select %p372, %s371, 15
        %s374 = smul.addr %s373, 8
        %s375 = scalar_lea.vmem %s1, %s374
        %s376 = smul.u32 8, %s24
        %v377 = vld [vmem:[%s370] sm:$0xff]
        %v378 = vld [vmem:[%s3] sm:$0xff]
        %v379 = vld [vmem:[%s3 + $0x8] sm:$0xff]
        %v380 = vld [vmem:[%s3 + $0x10] sm:$0xff]
        %v381 = vld [vmem:[%s3 + $0x18] sm:$0xff]
        %v382 = vld [vmem:[%s5] sm:$0x1]
        %v384 = vperm.slane %v382, 0
        %vm386 = vcmask 261120
        %v388 = vsel %vm386, %v377, 0
        %390 = vmatpush.msra.mxu0 0.0
        %391 = vmatpush.msra.mxu0 0.0
        %392 = vmatpush.msra.mxu0 0.0
        %393 = vmatpush.msra.mxu0 0.0
        %394 = vmatpush.msra.mxu0 0.0
        %395 = vmatpush.msra.mxu0 0.0
        %396 = vmatpush.msra.mxu0 0.0
        %397 = vmatpush.msra.mxu0 0.0
        %398 = vmatpush.msra.mxu0 0.0
        %399 = vmatpush.msra.mxu0 0.0
        %400 = vmatpush.msra.mxu0 0.0
        %401 = vmatpush.msra.mxu0 0.0
        %402 = vmatpush.msra.mxu0 %v381
        %403 = vmatpush.msra.mxu0 %v380
        %404 = vmatpush.msra.mxu0 %v379
        %405 = vmatpush.msra.mxu0 %v378
        %406 = vmatmul.f32.gmra.mxu0 %v388
        %v407 = vpop.f32.mrf.mxu0
        %v408 = vadd.f32 %v384, %v407
        %409 = vdwg.mxu0
        %v410 = vld [vmem:[%s375] sm:$0xff]
        %v411 = vld [vmem:[%s375 + $0x8] sm:$0xff]
        %v412 = vld [vmem:[%s375 + $0x10] sm:$0xff]
        %v413 = vld [vmem:[%s375 + $0x18] sm:$0xff]
        %v414 = vld [vmem:[%s375 + $0x20] sm:$0xff]
        %v415 = vld [vmem:[%s375 + $0x28] sm:$0xff]
        %v416 = vld [vmem:[%s375 + $0x30] sm:$0xff]
        %v417 = vld [vmem:[%s375 + $0x38] sm:$0xff]
        %v418 = vld [vmem:[%s4] sm:$0xff]
        %v419 = vld [vmem:[%s4 + $0x8] sm:$0xff]
        %v420 = vld [vmem:[%s4 + $0x10] sm:$0xff]
        %v421 = vld [vmem:[%s4 + $0x18] sm:$0xff]
        %v422 = vld [vmem:[%s7] sm:$0xff]
        %v423 = vld [vmem:[%s7 + $0x8] sm:$0xff]
        %v424 = vld [vmem:[%s7 + $0x10] sm:$0xff]
        %v425 = vld [vmem:[%s7 + $0x18] sm:$0xff]
        %v426 = vld [vmem:[%s7 + $0x20] sm:$0xff]
        %v427 = vld [vmem:[%s7 + $0x28] sm:$0xff]
        %v428 = vld [vmem:[%s7 + $0x30] sm:$0xff]
        %v429 = vld [vmem:[%s7 + $0x38] sm:$0xff]
        %vm430 = vcmask 64512
        %v432 = vsel %vm430, %v422, 0
        %v435 = vsel %vm430, %v423, 0
        %v438 = vsel %vm430, %v424, 0
        %v441 = vsel %vm430, %v425, 0
        %v444 = vsel %vm430, %v426, 0
        %v447 = vsel %vm430, %v427, 0
        %v450 = vsel %vm430, %v428, 0
        %v453 = vsel %vm430, %v429, 0
        %455 = vmatpush.msra.mxu0 0.0
        %456 = vmatpush.msra.mxu0 0.0
        %457 = vmatpush.msra.mxu0 0.0
        %458 = vmatpush.msra.mxu0 0.0
        %459 = vmatpush.msra.mxu0 0.0
        %460 = vmatpush.msra.mxu0 0.0
        %461 = vmatpush.msra.mxu0 0.0
        %462 = vmatpush.msra.mxu0 0.0
        %463 = vmatpush.msra.mxu0 0.0
        %464 = vmatpush.msra.mxu0 0.0
        %465 = vmatpush.msra.mxu0 0.0
        %466 = vmatpush.msra.mxu0 0.0
        %467 = vmatpush.msra.mxu0 0.0
        %468 = vmatpush.msra.mxu0 0.0
        %469 = vmatpush.msra.mxu0 0.0
        %470 = vmatpush.msra.mxu0 %v408
        %471 = vmatmul.f32.gmra.mxu0 %v432
        %v472 = vpop.f32.mrf.mxu0
        %v473 = vadd.f32 0.0, %v472
        %474 = vmatmul.f32.gmra.mxu0 %v435
        %v475 = vpop.f32.mrf.mxu0
        %v476 = vadd.f32 0.0, %v475
        %477 = vmatmul.f32.gmra.mxu0 %v438
        %v478 = vpop.f32.mrf.mxu0
        %v479 = vadd.f32 0.0, %v478
        %480 = vmatmul.f32.gmra.mxu0 %v441
        %v481 = vpop.f32.mrf.mxu0
        %v482 = vadd.f32 0.0, %v481
        %483 = vmatmul.f32.gmra.mxu0 %v444
        %v484 = vpop.f32.mrf.mxu0
        %v485 = vadd.f32 0.0, %v484
        %486 = vmatmul.f32.gmra.mxu0 %v447
        %v487 = vpop.f32.mrf.mxu0
        %v488 = vadd.f32 0.0, %v487
        %489 = vmatmul.f32.gmra.mxu0 %v450
        %v490 = vpop.f32.mrf.mxu0
        %v491 = vadd.f32 0.0, %v490
        %492 = vmatmul.f32.gmra.mxu0 %v453
        %v493 = vpop.f32.mrf.mxu0
        %v494 = vadd.f32 0.0, %v493
        %495 = vdwg.mxu0
        %v497 = vsel %vm386, %v410, 0
        %v500 = vsel %vm386, %v411, 0
        %v503 = vsel %vm386, %v412, 0
        %v506 = vsel %vm386, %v413, 0
        %v509 = vsel %vm386, %v414, 0
        %v512 = vsel %vm386, %v415, 0
        %v515 = vsel %vm386, %v416, 0
        %v518 = vsel %vm386, %v417, 0
        %520 = vmatpush.msra.mxu0 0.0
        %521 = vmatpush.msra.mxu0 0.0
        %522 = vmatpush.msra.mxu0 0.0
        %523 = vmatpush.msra.mxu0 0.0
        %524 = vmatpush.msra.mxu0 0.0
        %525 = vmatpush.msra.mxu0 0.0
        %526 = vmatpush.msra.mxu0 0.0
        %527 = vmatpush.msra.mxu0 0.0
        %528 = vmatpush.msra.mxu0 0.0
        %529 = vmatpush.msra.mxu0 0.0
        %530 = vmatpush.msra.mxu0 0.0
        %531 = vmatpush.msra.mxu0 0.0
        %532 = vmatpush.msra.mxu0 %v421
        %533 = vmatpush.msra.mxu0 %v420
        %534 = vmatpush.msra.mxu0 %v419
        %535 = vmatpush.msra.mxu0 %v418
        %536 = vmatmul.f32.gmra.mxu0 %v497
        %v537 = vpop.f32.mrf.mxu0
        %v538 = vadd.f32 %v473, %v537
        %539 = vmatmul.f32.gmra.mxu0 %v500
        %v540 = vpop.f32.mrf.mxu0
        %v541 = vadd.f32 %v476, %v540
        %542 = vmatmul.f32.gmra.mxu0 %v503
        %v543 = vpop.f32.mrf.mxu0
        %v544 = vadd.f32 %v479, %v543
        %545 = vmatmul.f32.gmra.mxu0 %v506
        %v546 = vpop.f32.mrf.mxu0
        %v547 = vadd.f32 %v482, %v546
        %548 = vmatmul.f32.gmra.mxu0 %v509
        %v549 = vpop.f32.mrf.mxu0
        %v550 = vadd.f32 %v485, %v549
        %551 = vmatmul.f32.gmra.mxu0 %v512
        %v552 = vpop.f32.mrf.mxu0
        %v553 = vadd.f32 %v488, %v552
        %554 = vmatmul.f32.gmra.mxu0 %v515
        %v555 = vpop.f32.mrf.mxu0
        %v556 = vadd.f32 %v491, %v555
        %557 = vmatmul.f32.gmra.mxu0 %v518
        %v558 = vpop.f32.mrf.mxu0
        %v559 = vadd.f32 %v494, %v558
        %560 = vdwg.mxu0
        %v561 = vtanh.pop %v538
        %v562 = vtanh.pop %v541
        %v563 = vtanh.pop %v544
        %v564 = vtanh.pop %v547
        %v565 = vtanh.pop %v550
        %v566 = vtanh.pop %v553
        %v567 = vtanh.pop %v556
        %v568 = vtanh.pop %v559
        %v569 = vld [vmem:[%s6] sm:$0x1]
        %v571 = vperm.slane %v569, 0
        %v573 = vmul.f32 %v561, %v571
        %v574 = vmul.f32 %v562, %v571
        %v575 = vmul.f32 %v563, %v571
        %v576 = vmul.f32 %v564, %v571
        %v577 = vmul.f32 %v565, %v571
        %v578 = vmul.f32 %v566, %v571
        %v579 = vmul.f32 %v567, %v571
        %v580 = vmul.f32 %v568, %v571
        %v581 = vsel %vm386, %v573, 0.0
        %582 = vadd.xlane.f32.xlu0 %v581
        %v583 = vpop.xlane.xlu0 %582
        %v584 = vsel %vm386, %v574, 0.0
        %585 = vadd.xlane.f32.xlu0 %v584
        %v586 = vpop.xlane.xlu0 %585
        %v587 = vsel %vm386, %v575, 0.0
        %588 = vadd.xlane.f32.xlu0 %v587
        %v589 = vpop.xlane.xlu0 %588
        %v590 = vsel %vm386, %v576, 0.0
        %591 = vadd.xlane.f32.xlu0 %v590
        %v592 = vpop.xlane.xlu0 %591
        %v593 = vsel %vm386, %v577, 0.0
        %594 = vadd.xlane.f32.xlu0 %v593
        %v595 = vpop.xlane.xlu0 %594
        %v596 = vsel %vm386, %v578, 0.0
        %597 = vadd.xlane.f32.xlu0 %v596
        %v598 = vpop.xlane.xlu0 %597
        %v599 = vsel %vm386, %v579, 0.0
        %600 = vadd.xlane.f32.xlu0 %v599
        %v601 = vpop.xlane.xlu0 %600
        %v602 = vsel %vm386, %v580, 0.0
        %603 = vadd.xlane.f32.xlu0 %v602
        %v604 = vpop.xlane.xlu0 %603
        %v605 = vld [vmem:[%s8] sm:$0xff]
        %v606 = vmul.f32 %v583, %v422
        %v607 = vmul.f32 %v586, %v423
        %v608 = vmul.f32 %v589, %v424
        %v609 = vmul.f32 %v592, %v425
        %v610 = vmul.f32 %v595, %v426
        %v611 = vmul.f32 %v598, %v427
        %v612 = vmul.f32 %v601, %v428
        %v613 = vmul.f32 %v604, %v429
        %vm614 = vcmask 523264
        %v616 = vsel %vm614, %v605, 0
        %618 = vmatpush.msra.mxu0 0.0
        %619 = vmatpush.msra.mxu0 0.0
        %620 = vmatpush.msra.mxu0 0.0
        %621 = vmatpush.msra.mxu0 0.0
        %622 = vmatpush.msra.mxu0 0.0
        %623 = vmatpush.msra.mxu0 0.0
        %624 = vmatpush.msra.mxu0 0.0
        %625 = vmatpush.msra.mxu0 0.0
        %626 = vmatpush.msra.mxu0 %v613
        %627 = vmatpush.msra.mxu0 %v612
        %628 = vmatpush.msra.mxu0 %v611
        %629 = vmatpush.msra.mxu0 %v610
        %630 = vmatpush.msra.mxu0 %v609
        %631 = vmatpush.msra.mxu0 %v608
        %632 = vmatpush.msra.mxu0 %v607
        %633 = vmatpush.msra.mxu0 %v606
        %634 = vmatmul.f32.gmra.mxu0 %v616
        %v635 = vpop.f32.mrf.mxu0
        %v636 = vadd.f32 0.0, %v635
        %637 = vdwg.mxu0
        %v638 = vsel %vm430, %v636, -inf
        %v639 = vrot.slane %v638, 4
        %v640 = vmax.f32 %v638, %v639
        %v641 = vrot.slane %v640, 2
        %v642 = vmax.f32 %v640, %v641
        %v643 = vrot.slane %v642, 1
        %v644 = vmax.f32 %v642, %v643
        %v645 = vsub.f32 %v636, %v644
        %v646 = vmul.f32 %v645, 1.442695
        %v647 = vpow.pop %v646
        %v648 = vld [vmem:[%s9] sm:$0xff]
        %v650 = vsel %vm430, %v647, 0
        %652 = vmatpush.msra.mxu0 0.0
        %653 = vmatpush.msra.mxu0 0.0
        %654 = vmatpush.msra.mxu0 0.0
        %655 = vmatpush.msra.mxu0 0.0
        %656 = vmatpush.msra.mxu0 0.0
        %657 = vmatpush.msra.mxu0 0.0
        %658 = vmatpush.msra.mxu0 0.0
        %659 = vmatpush.msra.mxu0 0.0
        %660 = vmatpush.msra.mxu0 0.0
        %661 = vmatpush.msra.mxu0 0.0
        %662 = vmatpush.msra.mxu0 0.0
        %663 = vmatpush.msra.mxu0 0.0
        %664 = vmatpush.msra.mxu0 0.0
        %665 = vmatpush.msra.mxu0 0.0
        %666 = vmatpush.msra.mxu0 0.0
        %667 = vmatpush.msra.mxu0 %v648
        %668 = vmatmul.f32.gmra.mxu0 %v650
        %v669 = vpop.f32.mrf.mxu0
        %v670 = vadd.f32 0.0, %v669
        %671 = vdwg.mxu0
        %v672 = vld [vmem:[%s2] sm:$0xff]
        %v673 = vmul.f32 %v670, %v672
        %v674 = vrot.slane %v673, 4
        %v675 = vadd.f32 %v673, %v674
        %v676 = vrot.slane %v675, 2
        %v677 = vadd.f32 %v675, %v676
        %v678 = vrot.slane %v677, 1
        %v679 = vadd.f32 %v677, %v678
        %v680 = vrcp.pop %v679
        %v681 = vmul.f32 %v679, %v680
        %v682 = vsub.f32 1.0, %v681
        %v683 = vmul.f32 %v680, %v682
        %v684 = vadd.f32 %v680, %v683
        %vm685 = vweird.f32 %v679
        %vm686 = vweird.f32 %v680
        %vm687 = vmor %vm685, %vm686
        %v688 = vsel %vm687, %v680, %v684
        %v689 = vand.u32 2147483647, %v679
        %vm690 = vcmp.eq.f32.partialorder %v689, 8.507059e+37
        %v691 = vand.u32 %v679, 2147483648
        %v692 = vor.u32 1.1754944e-38, %v691
        %v693 = vsel %vm690, %v692, %v688
        %v694 = vmul.f32 %v673, %v693
        %695 = vst [vmem:[%s366] sm:$0xff] %v694
        %s696 = sand.u32 %s252, 1
        %s697 = scalar_lea.sflag [#allocation3], %s696
        %s698 = sand.u32 %s252, 1
        %s699 = smul.addr %s698, 8
        %s700 = scalar_lea.vmem [#allocation2], %s699
        // Predicated region
        $region61: #{tpu_custom_call.1} parent=59 // pred_check
          %p701 = pneg %p262
        $region62: #{tpu_custom_call.1} parent=59 // pred_check_branch
          %703 = sbr.rel (%p701) target = $region64
        $region63: #{tpu_custom_call.1} parent=59 // pred_region
          %705 = vsyncadd %s697, 0
          %s706 = smul.addr %s24, 8
          %s707 = scalar_lea.hbm %s10, %s706
          %s709 = sshll.u32 %s700, 4
          %s710 = int_to_ptr.vmem [resolvable:$true] %s709
          %s711 = sshll.u32 %s707, 4
          %s712 = int_to_ptr.hbm [resolvable:$true] %s711
          %714 = dma.vmem_to_hbm [thread:$0]  %s710, 128, %s712, %s697
        $region64: #{tpu_custom_call.1} parent=59 // pred_fallthru
          _
      $region60: #{tpu_custom_call.1} parent=5 // pred_fallthru
        _
      %p715 = scmp.le.s32.totalorder 2, %s19
      // Predicated region
      $region65: #{tpu_custom_call.1} parent=5 // pred_check
        %p716 = pneg %p715
      $region66: #{tpu_custom_call.1} parent=5 // pred_check_branch
        %718 = sbr.rel (%p716) target = $region68
      $region67: #{tpu_custom_call.1} parent=5 // pred_region
        %s719 = ssub.s32 %s19, 2
        // Predicated region
        $region69: #{tpu_custom_call.1} parent=67 // pred_check
          %p720 = pneg %p268
        $region70: #{tpu_custom_call.1} parent=67 // pred_check_branch
          %722 = sbr.rel (%p720) target = $region72
        $region71: #{tpu_custom_call.1} parent=67 // pred_region
          %s723 = sand.u32 %s253, 1
          %s724 = scalar_lea.sflag [#allocation3], %s723
          %s725 = sand.u32 %s253, 1
          %s726 = smul.addr %s725, 8
          %s727 = scalar_lea.vmem [#allocation2], %s726
          %729 = dma.done %s724, 128
        $region72: #{tpu_custom_call.1} parent=67 // pred_fallthru
          _
      $region68: #{tpu_custom_call.1} parent=5 // pred_fallthru
        _
    $region6: #{tpu_custom_call.1} parent=1 // loop_footer
      %s23 = sadd.s32 1, %s19
    $region7: #{tpu_custom_call.1} parent=1 // loop_footer_branch
      %18 = sbr.rel target = $region3
    $region8: #{tpu_custom_call.1} parent=1 // loop_exit
      _
    %730 = vsyncpa [#allocation3], 1
    %s731 = scalar_lea.sflag [#allocation3], 1
    %732 = vsyncpa %s731, 1

</llo_original>
